<compile_context>
chip_gen: v6e
topology: v6e:2x2x1
jax: 0.10.0
libtpu: 0.0.40
codegen_flags: <defaults>
</compile_context>

<pallas_src>
import functools

import numpy as np

import jax
import jax.numpy as jnp
from jax.experimental import pallas as pl
from jax.experimental.pallas import tpu as pltpu


KERNEL_SIZE = 25  # fixed inside DLinear.Model


def _round_up(x: int, m: int) -> int:
    return (x + m - 1) // m * m


# ----------------------------------------------------------------------------
# constant moving-average operator (edge-replicated AvgPool1d, stride 1)
# ----------------------------------------------------------------------------
def moving_average_matrix(seq_len: int, kernel_size: int = KERNEL_SIZE) -> jnp.ndarray:
    """M such that trend = x2d @ M reproduces series_decomp's moving_avg."""
    pad = (kernel_size - 1) // 2
    m = np.zeros((seq_len, seq_len), dtype=np.float32)
    inv_k = 1.0 / kernel_size
    for t in range(seq_len):
        for j in range(kernel_size):
            s = min(max(t + j - pad, 0), seq_len - 1)   # edge replication
            m[s, t] += inv_k
    return jnp.asarray(m)


# ----------------------------------------------------------------------------
# parameters (PyTorch nn.Linear-style init) + one-time algebraic fusion
# ----------------------------------------------------------------------------
def init_params(key, *, seq_len, pred_len):
    """Raw DLinear parameters (weights stored transposed: [in, out])."""
    k1, k2, k3, k4 = jax.random.split(key, 4)
    bound = 1.0 / float(seq_len) ** 0.5

    def unif(k, shape):
        return jax.random.uniform(k, shape, jnp.float32, -bound, bound)

    return {
        "Ws_T": unif(k1, (seq_len, pred_len)),   # Linear_Seasonal.weight.T
        "b_s": unif(k2, (1, pred_len)),
        "Wt_T": unif(k3, (seq_len, pred_len)),   # Linear_Trend.weight.T
        "b_t": unif(k4, (1, pred_len)),
    }


def fuse_dlinear_params(raw, *, compute_dtype=jnp.bfloat16,
                        kernel_size=KERNEL_SIZE):
    """Fold series_decomp + both Linears into one weight/bias (done once, host side)."""
    L, P = raw["Ws_T"].shape
    M = moving_average_matrix(L, kernel_size)                       # [L, L] f32
    # out = x @ (Ws^T + M @ (Wt^T - Ws^T)) + (b_s + b_t)  -- exact algebra.
    W = raw["Ws_T"] + jnp.dot(M, raw["Wt_T"] - raw["Ws_T"],
                              precision=jax.lax.Precision.HIGHEST)  # [L, P] f32
    b = (raw["b_s"] + raw["b_t"]).reshape(1, P)                     # [1, P] f32

    # Rows-major layout (small C): pad P to a lane multiple -> unmasked stores.
    Pp = _round_up(P, 128)
    W_rows = jnp.zeros((L, Pp), jnp.float32).at[:, :P].set(W).astype(compute_dtype)
    b_rows = jnp.zeros((1, Pp), jnp.float32).at[:, :P].set(b)

    # Channels-major layout (wide C): transposed weight, P padded to sublanes.
    Pp8 = _round_up(P, 8)
    W_chan = jnp.zeros((Pp8, L), jnp.float32).at[:P, :].set(W.T).astype(compute_dtype)
    b_chan = jnp.zeros((Pp8, 1), jnp.float32).at[:P, :].set(b.reshape(P, 1))

    return {"pred_len": P,
            "W_rows": W_rows, "b_rows": b_rows,      # [L, Pp],  [1, Pp]
            "W_chan": W_chan, "b_chan": b_chan}      # [Pp8, L], [Pp8, 1]


# ----------------------------------------------------------------------------
# Pallas kernels: one fused matmul + bias per tile, weights VMEM-resident
# ----------------------------------------------------------------------------
def _rows_kernel(x_ref, w_ref, b_ref, out_ref):
    # x tile [R, L] (time on lanes) @ fused weight [L, Pp] -> [R, Pp]
    x = x_ref[...].astype(w_ref.dtype)                     # bf16 cast (VPU, cheap)
    acc = jnp.dot(x, w_ref[...], preferred_element_type=jnp.float32)
    out_ref[...] = (acc + b_ref[...]).astype(out_ref.dtype)


def _chan_kernel(x_ref, w_ref, b_ref, out_ref):
    # fused weight^T [Pp8, L] @ x tile [L, Ct] (channels on lanes) -> [Pp8, Ct]
    x = x_ref[...].astype(w_ref.dtype)
    acc = jnp.dot(w_ref[...], x, preferred_element_type=jnp.float32)
    out_ref[...] = (acc + b_ref[...]).astype(out_ref.dtype)


# ----------------------------------------------------------------------------
# forward
# ----------------------------------------------------------------------------
def _forward_rows_major(x, fused, P):
    """Small C: rows = B*C series, time on lanes, pred_len (padded) on lanes out."""
    B, L, C = x.shape
    W, b = fused["W_rows"], fused["b_rows"]
    Pp = W.shape[1]
    N = B * C

    # [B, L, C] -> [B*C, L]  (one relayout pass; only used when C is small)
    x2d = jnp.transpose(x, (0, 2, 1)).reshape(N, L)

    # Row tiling: multiple of 8 sublanes, <= ~512 rows/tile, padding < one tile,
    # and >= 2 grid steps whenever possible so v7x megacore shards the grid.
    num_tiles = pl.cdiv(N, 512)
    if num_tiles == 1 and N >= 16:
        num_tiles = 2
    tile_r = _round_up(pl.cdiv(N, num_tiles), 8)
    n_pad = _round_up(N, tile_r)
    if n_pad != N:
        x2d = jnp.pad(x2d, ((0, n_pad - N), (0, 0)))
    grid = (n_pad // tile_r,)

    out2d = pl.pallas_call(
        _rows_kernel,
        out_shape=jax.ShapeDtypeStruct((n_pad, Pp), x.dtype),
        grid=grid,
        in_specs=[
            pl.BlockSpec((tile_r, L), lambda i: (i, 0)),   # activations: tiled rows
            pl.BlockSpec((L, Pp), lambda i: (0, 0)),       # fused weight: resident
            pl.BlockSpec((1, Pp), lambda i: (0, 0)),       # fused bias: resident
        ],
        out_specs=pl.BlockSpec((tile_r, Pp), lambda i: (i, 0)),
        compiler_params=pltpu.CompilerParams(
            dimension_semantics=("parallel",)),
    )(x2d, W, b)

    out2d = out2d[:N, :P]                                  # drop row/lane padding
    return jnp.transpose(out2d.reshape(B, C, P), (0, 2, 1))   # [B, pred_len, C]


def _forward_channels_major(x, fused, P):
    """Wide C (>=128): keep C on lanes, contract over L -> no HBM relayouts at all."""
    B, L, C = x.shape
    W, b = fused["W_chan"], fused["b_chan"]                # [Pp8, L], [Pp8, 1]
    Pp8 = W.shape[0]

    # Tile channels only if a full-C block would get large in VMEM.
    nc = pl.cdiv(C, 512)
    if nc == 1:
        ct, c_pad = C, C
    else:
        ct = _round_up(pl.cdiv(C, nc), 128)
        c_pad = _round_up(C, ct)
        nc = c_pad // ct
    xp = x if c_pad == C else jnp.pad(x, ((0, 0), (0, 0), (0, c_pad - C)))

    out = pl.pallas_call(
        _chan_kernel,
        out_shape=jax.ShapeDtypeStruct((B, Pp8, c_pad), x.dtype),
        grid=(B, nc),
        in_specs=[
            pl.BlockSpec((None, L, ct), lambda bi, ci: (bi, 0, ci)),  # x[b]
            pl.BlockSpec((Pp8, L), lambda bi, ci: (0, 0)),            # weight^T: resident
            pl.BlockSpec((Pp8, 1), lambda bi, ci: (0, 0)),            # bias: resident
        ],
        out_specs=pl.BlockSpec((None, Pp8, ct), lambda bi, ci: (bi, 0, ci)),
        compiler_params=pltpu.CompilerParams(
            dimension_semantics=("parallel", "parallel")),
    )(xp, W, b)

    return out[:, :P, :C]                                  # [B, pred_len, C]


def dlinear_decomp_forward(x, fused):
    """Dlinear_decomp.forward: x [B, seq_len, C] -> (season, trend_pred_fine)."""
    B, L, C = x.shape
    P = fused["pred_len"]
    if C >= 128:
        trend_pred = _forward_channels_major(x, fused, P)
    else:
        trend_pred = _forward_rows_major(x, fused, P)
    season = x  # identity branch of Dlinear_decomp.forward
    return season, trend_pred


# ----------------------------------------------------------------------------
# pure-JAX reference (unfused, explicit moving average) for verification
# ----------------------------------------------------------------------------
def dlinear_reference(x, raw, kernel_size=KERNEL_SIZE):
    B, L, C = x.shape
    pad = (kernel_size - 1) // 2
    front = jnp.repeat(x[:, :1, :], pad, axis=1)
    end = jnp.repeat(x[:, -1:, :], pad, axis=1)
    xp = jnp.concatenate([front, x, end], axis=1)
    trend = jnp.stack(
        [xp[:, t:t + kernel_size, :].mean(axis=1) for t in range(L)], axis=1)
    seasonal = x - trend
    hi = jax.lax.Precision.HIGHEST
    s_out = jnp.einsum("blc,lp->bpc", seasonal, raw["Ws_T"], precision=hi) \
        + raw["b_s"][0][None, :, None]
    t_out = jnp.einsum("blc,lp->bpc", trend, raw["Wt_T"], precision=hi) \
        + raw["b_t"][0][None, :, None]
    return s_out + t_out


if __name__ == "__main__":
    key = jax.random.PRNGKey(0)
    kx, kp, kx2 = jax.random.split(key, 3)

    # --- small-C case (rows-major path), bf16 MXU operands ------------------
    B, L, C, P = 2, 32, 4, 16
    x = jax.random.normal(kx, (B, L, C), jnp.float32)
    raw = init_params(kp, seq_len=L, pred_len=P)
    ref = dlinear_reference(x, raw)

    fused_bf16 = fuse_dlinear_params(raw, compute_dtype=jnp.bfloat16)
    fwd = jax.jit(functools.partial(dlinear_decomp_forward, fused=fused_bf16))
    season, trend_pred = jax.block_until_ready(fwd(x))
    assert season.shape == (B, L, C) and trend_pred.shape == (B, P, C)
    assert jnp.allclose(season, x)
    err_bf16 = float(jnp.max(jnp.abs(trend_pred - ref)))
    assert err_bf16 < 5e-2, err_bf16      # bf16 operands, f32 accumulate

    # --- same case with f32 weights: tight numerical check ------------------
    fused_f32 = fuse_dlinear_params(raw, compute_dtype=jnp.float32)
    fwd32 = jax.jit(functools.partial(dlinear_decomp_forward, fused=fused_f32))
    _, trend_pred32 = jax.block_until_ready(fwd32(x))
    err_f32 = float(jnp.max(jnp.abs(trend_pred32 - ref)))
    assert err_f32 < 2e-3, err_f32

    # --- wide-C case (channels-major, transpose-free path) ------------------
    B2, L2, C2, P2 = 2, 32, 256, 16
    x2 = jax.random.normal(kx2, (B2, L2, C2), jnp.float32)
    raw2 = init_params(kp, seq_len=L2, pred_len=P2)
    fused2 = fuse_dlinear_params(raw2, compute_dtype=jnp.bfloat16)
    fwd2 = jax.jit(functools.partial(dlinear_decomp_forward, fused=fused2))
    season2, trend_pred2 = jax.block_until_ready(fwd2(x2))
    assert season2.shape == (B2, L2, C2) and trend_pred2.shape == (B2, P2, C2)
    assert jnp.allclose(season2, x2)
    err_wide = float(jnp.max(jnp.abs(trend_pred2 - dlinear_reference(x2, raw2))))
    assert err_wide < 5e-2, err_wide

    print("KERNEL_OK")
</pallas_src>

<mosaic_0001>
module attributes {stable_mosaic.version = 11 : i64} {
  func.func @_rows_kernel(%arg0: i32, %arg1: memref<8x32xf32, #tpu.memory_space<vmem>>, %arg2: memref<32x128xbf16, #tpu.memory_space<vmem>>, %arg3: memref<1x128xf32, #tpu.memory_space<vmem>>, %arg4: memref<8x128xf32, #tpu.memory_space<vmem>>) attributes {dimension_semantics = [#tpu.dimension_semantics<parallel>], iteration_bounds = array<i64: 1>, scalar_prefetch = 0 : i64, scratch_operands = 0 : i64, tpu.core_type = #tpu.core_type<tc>, window_params = [{transform_indices = @transform_0, window_bounds = array<i64: 8, 32>}, {pipeline_mode = #tpu.pipeline_mode<synchronous>, transform_indices = @transform_1, window_bounds = array<i64: 32, 128>}, {pipeline_mode = #tpu.pipeline_mode<synchronous>, transform_indices = @transform_2, window_bounds = array<i64: 1, 128>}, {transform_indices = @transform_3, window_bounds = array<i64: 8, 128>}]} {
    %c0 = arith.constant 0 : index
    %c0_0 = arith.constant 0 : index
    %0 = vector.load %arg1[%c0, %c0_0] : memref<8x32xf32, #tpu.memory_space<vmem>>, vector<8x32xf32>
    %1 = arith.truncf %0 : vector<8x32xf32> to vector<8x32xbf16>
    %c0_1 = arith.constant 0 : index
    %c0_2 = arith.constant 0 : index
    %2 = vector.load %arg2[%c0_1, %c0_2] : memref<32x128xbf16, #tpu.memory_space<vmem>>, vector<32x128xbf16>
    %cst = arith.constant dense<0.000000e+00> : vector<8x128xf32>
    %3 = tpu.matmul %1, %2, %cst {dimension_numbers = #tpu.dot_dimension_numbers<[1], [0], [0], [1], [0, 0, 1, 1], [], []>} : vector<8x32xbf16>, vector<32x128xbf16>, vector<8x128xf32> -> vector<8x128xf32>
    %c0_3 = arith.constant 0 : index
    %c0_4 = arith.constant 0 : index
    %4 = vector.load %arg3[%c0_3, %c0_4] : memref<1x128xf32, #tpu.memory_space<vmem>>, vector<1x128xf32>
    %5 = vector.broadcast %4 : vector<1x128xf32> to vector<8x128xf32>
    %6 = arith.addf %3, %5 : vector<8x128xf32>
    %c0_5 = arith.constant 0 : index
    %c0_6 = arith.constant 0 : index
    %7 = vector.load %arg4[%c0_5, %c0_6] : memref<8x128xf32, #tpu.memory_space<vmem>>, vector<8x128xf32>
    tpu.vector_store %arg4[%c0_5, %c0_6], %6 {strides = array<i32>} : memref<8x128xf32, #tpu.memory_space<vmem>>, vector<8x128xf32>,
    return
  }
  func.func @transform_0(%arg0: i32) -> (i32, i32) {
    %c0_i32 = arith.constant 0 : i32
    %c0_i32_0 = arith.constant 0 : i32
    return %arg0, %c0_i32 : i32, i32
  }
  func.func @transform_1(%arg0: i32) -> (i32, i32) {
    %c0_i32 = arith.constant 0 : i32
    %c0_i32_0 = arith.constant 0 : i32
    %c0_i32_1 = arith.constant 0 : i32
    return %c0_i32, %c0_i32_0 : i32, i32
  }
  func.func @transform_2(%arg0: i32) -> (i32, i32) {
    %c0_i32 = arith.constant 0 : i32
    %c0_i32_0 = arith.constant 0 : i32
    %c0_i32_1 = arith.constant 0 : i32
    return %c0_i32, %c0_i32_0 : i32, i32
  }
  func.func @transform_3(%arg0: i32) -> (i32, i32) {
    %c0_i32 = arith.constant 0 : i32
    %c0_i32_0 = arith.constant 0 : i32
    return %arg0, %c0_i32 : i32, i32
  }
}

</mosaic_0001>

<llo_original>
// kernel: dlinear_decomp_forward.1
$region0: #{dlinear_decomp_forward.1}
  #allocation0 [shape = 'u32[]', space=smem, size = 0x4, offset = 0x4, fixed_abs, tag = 'smem constant byte address 0x4 - core index']
  #allocation1 [shape = 'u32[144,128]{1,0:T(1,128)}', space=vmem, size = 0x12000, scoped, tag = 'internal scratch']
  %s0 = inlined_call_operand.hbm [shape: f32[8,32], index: 0, kind: input, shape index: {}]
  %s1 = inlined_call_operand.hbm [shape: bf16[32,128], index: 1, kind: input, shape index: {}]
  %s2 = inlined_call_operand.vmem [shape: f32[1,128], index: 2, kind: input, shape index: {}]
  %s3 = inlined_call_operand.hbm [shape: f32[8,128], index: 3, kind: output, shape index: {}]
  %s4 = sld [smem:[#allocation0]]
  $region30: #{dlinear_decomp_forward.1} parent=0
    _
  %s6 = ssub.s32 1, %s4
  %s7 = scalar_select 0, %s6, %s4
  $region1: #{dlinear_decomp_forward.1} parent=0
    #allocation2 [shape = 'u8[4096]{0}', space=vmem, size = 0x1000, scoped, tag = 'input window, operand 0, single buffered']
    #allocation3 [shape = 's32[1]{0}', space=sflag, size = 0x4, scoped, tag = 'scoped memory for dlinear_decomp_forward.1']
    #allocation4 [shape = 's32[1]{0}', space=sflag, size = 0x4, scoped, tag = 'scoped memory for dlinear_decomp_forward.1']
    #allocation5 [shape = 'u8[8192]{0}', space=vmem, size = 0x2000, scoped, tag = 'input window, operand 1, single buffered']
    #allocation6 [shape = 's32[1]{0}', space=sflag, size = 0x4, scoped, tag = 'scoped memory for dlinear_decomp_forward.1']
    #allocation7 [shape = 'u8[4096]{0}', space=vmem, size = 0x1000, scoped, tag = 'output window, operand 0, single buffered']
    %8 = vsyncpa [#allocation3], 0
    %9 = vsyncpa [#allocation6], 0
    %10 = vsyncpa [#allocation4], 0
    // Predicated region
    $region2: #{dlinear_decomp_forward.1} parent=1 // pred_check
      _
    $region3: #{dlinear_decomp_forward.1} parent=1 // pred_check_branch
      %12 = sbr.rel (0) target = $region5
    $region4: #{dlinear_decomp_forward.1} parent=1 // pred_region
      %s14 = ssub.s32 128, 128
      %15 = vsyncadd [#allocation3], %s14
      %s17 = sshll.u32 [#allocation2], 4
      %s18 = int_to_ptr.vmem [resolvable:$true] %s17
      %20 = dma.hbm_to_vmem [thread:$0]  %s0, 128, %s18, [#allocation3]
    $region5: #{dlinear_decomp_forward.1} parent=1 // pred_fallthru
      _
    // Predicated region
    $region6: #{dlinear_decomp_forward.1} parent=1 // pred_check
      _
    $region7: #{dlinear_decomp_forward.1} parent=1 // pred_check_branch
      %22 = sbr.rel (0) target = $region9
    $region8: #{dlinear_decomp_forward.1} parent=1 // pred_region
      %s24 = ssub.s32 256, 256
      %25 = vsyncadd [#allocation6], %s24
      %s26 = sshll.u32 [#allocation5], 4
      %s27 = int_to_ptr.vmem [resolvable:$true] %s26
      %32 = dma.hbm_to_vmem [thread:$0]  %s1, 256, %s27, [#allocation6], 64, 64, 4
    $region9: #{dlinear_decomp_forward.1} parent=1 // pred_fallthru
      _
    // Predicated region
    $region10: #{dlinear_decomp_forward.1} parent=1 // pred_check
      _
    $region11: #{dlinear_decomp_forward.1} parent=1 // pred_check_branch
      %34 = sbr.rel (0) target = $region13
    $region12: #{dlinear_decomp_forward.1} parent=1 // pred_region
      _
    $region13: #{dlinear_decomp_forward.1} parent=1 // pred_fallthru
      _
    // Predicated region
    $region14: #{dlinear_decomp_forward.1} parent=1 // pred_check
      _
    $region15: #{dlinear_decomp_forward.1} parent=1 // pred_check_branch
      %36 = sbr.rel (0) target = $region17
    $region16: #{dlinear_decomp_forward.1} parent=1 // pred_region
      %37 = dma.done [#allocation3], 128
    $region17: #{dlinear_decomp_forward.1} parent=1 // pred_fallthru
      _
    // Predicated region
    $region18: #{dlinear_decomp_forward.1} parent=1 // pred_check
      _
    $region19: #{dlinear_decomp_forward.1} parent=1 // pred_check_branch
      %39 = sbr.rel (0) target = $region21
    $region20: #{dlinear_decomp_forward.1} parent=1 // pred_region
      %40 = dma.done [#allocation6], 256
    $region21: #{dlinear_decomp_forward.1} parent=1 // pred_fallthru
      _
    %v42 = vld [vmem:[#allocation2] sm:$0xff]
    %v43 = vpack.c.bf16 %v42, %v42
    %v44 = vld [vmem:[#allocation5] sm:$0xf]
    %v45 = vld [vmem:[#allocation5 + $0x4] sm:$0xf]
    %v46 = vld [vmem:[#allocation5 + $0x8] sm:$0xf]
    %v47 = vld [vmem:[#allocation5 + $0xc] sm:$0xf]
    %v48 = vld [vmem:[%s2] sm:$0x1]
    %v50 = vlaneseq
    %v51 = vshrl.u32 %v50, 7
    %v52 = vsub.s32 0, %v51
    %v53 = vrot.slane %v48, %v52
    %v59 = vunpack.c.l.b16 %v44
    %v60 = vunpack.c.l.b16 %v45
    %v61 = vunpack.c.l.b16 %v46
    %v62 = vunpack.c.l.b16 %v47
    %v63 = vpack.c.b16 %v60, %v59
    %v64 = vpack.c.b16 %v62, %v61
    %vm67 = vcmask 261120
    %v69 = vsel %vm67, %v43, 0
    %71 = vmatprep.subr.bf16.mxu0 0
    %72 = vmatpush1.bf16.msra.mxu0 0
    %73 = vmatprep.subr.bf16.mxu0 0
    %74 = vmatpush1.bf16.msra.mxu0 0
    %75 = vmatprep.subr.bf16.mxu0 0
    %76 = vmatpush1.bf16.msra.mxu0 0
    %77 = vmatprep.subr.bf16.mxu0 0
    %78 = vmatpush1.bf16.msra.mxu0 0
    %79 = vmatprep.subr.bf16.mxu0 0
    %80 = vmatpush1.bf16.msra.mxu0 0
    %81 = vmatprep.subr.bf16.mxu0 0
    %82 = vmatpush1.bf16.msra.mxu0 0
    %83 = vmatprep.subr.bf16.mxu0 0
    %84 = vmatpush1.bf16.msra.mxu0 %v64
    %85 = vmatprep.subr.bf16.mxu0 0
    %86 = vmatpush1.bf16.msra.mxu0 %v63
    %87 = vmatprep.subr.bf16.mxu0 0
    %88 = vmatpush2.bf16.msra.mxu0 0
    %89 = vmatprep.subr.bf16.mxu0 0
    %90 = vmatpush2.bf16.msra.mxu0 0
    %91 = vmatprep.subr.bf16.mxu0 0
    %92 = vmatpush2.bf16.msra.mxu0 0
    %93 = vmatprep.subr.bf16.mxu0 0
    %94 = vmatpush2.bf16.msra.mxu0 0
    %95 = vmatprep.subr.bf16.mxu0 0
    %96 = vmatpush2.bf16.msra.mxu0 0
    %97 = vmatprep.subr.bf16.mxu0 0
    %98 = vmatpush2.bf16.msra.mxu0 0
    %99 = vmatprep.subr.bf16.mxu0 0
    %100 = vmatpush2.bf16.msra.mxu0 0
    %101 = vmatprep.subr.bf16.mxu0 0
    %102 = vmatpush2.bf16.msra.mxu0 0
    %103 = vmatprep.mubr.bf16.mxu0 0
    %104 = vmatmul.mubr.bf16.gmra.mxu0 %v69
    %v105 = vpop.f32.mrf.mxu0
    %v106 = vadd.f32 %v53, %v105
    %v107 = vpop.f32.mrf.mxu0
    %v108 = vpop.f32.mrf.mxu0
    %v109 = vpop.f32.mrf.mxu0
    %110 = vdwg.mxu0
    %111 = vst [vmem:[#allocation7] sm:$0xff] %v106
    // Predicated region
    $region22: #{dlinear_decomp_forward.1} parent=1 // pred_check
      _
    $region23: #{dlinear_decomp_forward.1} parent=1 // pred_check_branch
      %113 = sbr.rel (0) target = $region25
    $region24: #{dlinear_decomp_forward.1} parent=1 // pred_region
      %s115 = ssub.s32 128, 128
      %116 = vsyncadd [#allocation4], %s115
      %s118 = sshll.u32 [#allocation7], 4
      %s119 = int_to_ptr.vmem [resolvable:$true] %s118
      %121 = dma.vmem_to_hbm [thread:$0]  %s119, 128, %s3, [#allocation4]
    $region25: #{dlinear_decomp_forward.1} parent=1 // pred_fallthru
      _
    // Predicated region
    $region26: #{dlinear_decomp_forward.1} parent=1 // pred_check
      _
    $region27: #{dlinear_decomp_forward.1} parent=1 // pred_check_branch
      %123 = sbr.rel (0) target = $region29
    $region28: #{dlinear_decomp_forward.1} parent=1 // pred_region
      %124 = dma.done [#allocation4], 128
    $region29: #{dlinear_decomp_forward.1} parent=1 // pred_fallthru
      _
    %125 = vsyncpa [#allocation3], 1
    %126 = vsyncpa [#allocation6], 1
    %127 = vsyncpa [#allocation4], 1

</llo_original>
